<compile_context>
chip_gen: v7x
topology: tpu7x:2x2x1
jax: 0.10.0
libtpu: 0.0.40
codegen_flags: <defaults>
</compile_context>

<pallas_src>
import functools

import numpy as np
import jax
import jax.numpy as jnp
from jax.experimental import pallas as pl
from jax.experimental.pallas import tpu as pltpu

# ----------------------------- hyper params ---------------------------------
SAMPLE_RATE = 16000
WINDOW_SIZE = 64          # n_fft
HOP_SIZE = 16
MEL_BINS = 8
FMIN = 50
FMAX = 8000
NUM_CLASSES = 10
CHANNELS = 1              # in_chans to backbone; preprocess always yields 1
BATCH = 2
AUDIO_LEN = 1024

AMIN = 1e-10              # LogmelFilterBank amin (ref=1.0, top_db=None)
BN_EPS = 1e-5
GEM_EPS = 1e-6
GEM_P = 3.0
LOG10_SCALE = float(10.0 / np.log(10.0))
FP = 64                   # lane-padded size for F = n_fft//2+1 = 33 bins
N_CHUNKS = WINDOW_SIZE // HOP_SIZE          # 4 hop blocks per frame
assert WINDOW_SIZE % HOP_SIZE == 0


# ------------------------- deterministic parameters -------------------------
def stft_matrices(n_fft):
    """Windowed DFT matrices matching STFT.conv_real / conv_imag (transposed)."""
    n = np.arange(n_fft)
    k = np.arange(n_fft // 2 + 1)
    window = 0.5 - 0.5 * np.cos(2.0 * np.pi * n / n_fft)     # periodic hann
    ang = 2.0 * np.pi * np.outer(n, k) / n_fft               # (n_fft, F)
    wr = np.cos(ang) * window[:, None]
    wi = -np.sin(ang) * window[:, None]
    return wr.astype(np.float32), wi.astype(np.float32)


def mel_filterbank(sr, n_fft, n_mels, fmin, fmax):
    """Slaney-style mel filterbank (librosa.filters.mel equivalent), returned
    already transposed as melW with shape (n_fft//2+1, n_mels)."""
    f_sp = 200.0 / 3
    min_log_hz = 1000.0
    min_log_mel = min_log_hz / f_sp
    logstep = np.log(6.4) / 27.0

    def hz_to_mel(f):
        f = np.asarray(f, dtype=np.float64)
        mels = f / f_sp
        return np.where(f >= min_log_hz,
                        min_log_mel + np.log(np.maximum(f, min_log_hz) / min_log_hz) / logstep,
                        mels)

    def mel_to_hz(m):
        m = np.asarray(m, dtype=np.float64)
        freqs = f_sp * m
        return np.where(m >= min_log_mel,
                        min_log_hz * np.exp(logstep * (m - min_log_mel)),
                        freqs)

    fftfreqs = np.linspace(0.0, sr / 2.0, n_fft // 2 + 1)
    mel_pts = mel_to_hz(np.linspace(hz_to_mel(fmin), hz_to_mel(fmax), n_mels + 2))
    fdiff = np.diff(mel_pts)
    ramps = mel_pts[:, None] - fftfreqs[None, :]
    lower = -ramps[:-2] / fdiff[:-1, None]
    upper = ramps[2:] / fdiff[1:, None]
    weights = np.maximum(0.0, np.minimum(lower, upper))
    enorm = 2.0 / (mel_pts[2:n_mels + 2] - mel_pts[:n_mels])
    weights = weights * enorm[:, None]
    return weights.T.astype(np.float32)                       # (F, n_mels)


# ------------------------------ fused Pallas kernel --------------------------
def fused_kernel(p_ref, hb_ref, wric_ref, mel2T_ref, aux_ref, out_ref,
                 *, T, inv_spatial):
    """One batch element per grid step: hop-blocked wave -> logits row."""
    # hb[h, k] = padded_wave[b, k*HOP + h]   (HOP, n_blocks)
    hb = hb_ref[0]

    # STFT, transposed so frames (T) sit on lanes:
    #   riT[:, t] = sum_j wric[j] @ hb[:, t + j]         -> (2*FP, T)
    riT = jnp.dot(wric_ref[0], hb[:, 0:T], preferred_element_type=jnp.float32)
    for j in range(1, N_CHUNKS):
        riT = riT + jnp.dot(wric_ref[j], hb[:, j:j + T],
                            preferred_element_type=jnp.float32)

    # power spectrum; padded lanes of riT are exactly zero.
    sq = riT * riT                                             # (2*FP, T)
    # (real^2 + imag^2) @ melW folded into one matmul via stacked mel weights.
    mel = jnp.dot(mel2T_ref[...], sq,
                  preferred_element_type=jnp.float32)          # (M, T)

    # power_to_db (ref=1, top_db=None) with 10/ln(10) and eval-mode
    # BatchNorm2d(mel_bins) folded into per-mel scale/shift (aux cols 0/1).
    scale = aux_ref[0:MEL_BINS, 0:1]                           # (M, 1)
    shift = aux_ref[0:MEL_BINS, 1:2]                           # (M, 1)
    feat = jnp.log(jnp.maximum(mel, AMIN)) * scale + shift     # (M, T) lane-dense

    # GeM pooling over the (T, M) spatial extent of this batch element.
    p = p_ref[0]                                               # scalar (SMEM)
    xc = jnp.maximum(feat, GEM_EPS)
    xp = jnp.exp(p * jnp.log(xc))                              # x.pow(p)
    pooled = jnp.sum(jnp.sum(xp, axis=1, keepdims=True),
                     axis=0, keepdims=True) * inv_spatial      # (1, 1)
    gem = jnp.exp(jnp.log(pooled) / p)                         # .pow(1/p)

    # Linear head with n_features == 1: rank-1 VPU broadcast (aux rows M, M+1).
    w_row = aux_ref[MEL_BINS:MEL_BINS + 1, 0:NUM_CLASSES]      # (1, NC)
    b_row = aux_ref[MEL_BINS + 1:MEL_BINS + 2, 0:NUM_CLASSES]  # (1, NC)
    out_ref[0] = gem * w_row + b_row                           # (1, NC)


# ------------------------------ host wrapper ---------------------------------
def effv2_gem_forward(wave, kp):
    """Full forward: waveform (B, L) -> logits (B, num_classes)."""
    B, L = wave.shape
    n_fft = WINDOW_SIZE
    T = L // HOP_SIZE + 1
    NC = NUM_CLASSES

    # center=True reflect padding (matches torch F.pad reflect).
    padded = jnp.pad(wave, ((0, 0), (n_fft // 2, n_fft // 2)), mode="reflect")
    extra = (-padded.shape[1]) % HOP_SIZE
    if extra:
        padded = jnp.pad(padded, ((0, 0), (0, extra)))
    nb = padded.shape[1] // HOP_SIZE
    assert nb >= T - 1 + N_CHUNKS
    # Hop-blocking: pure reshape + transpose (no gather, no 4x frame copy).
    # hb[b, h, k] = padded[b, k*HOP + h]
    hb = jnp.transpose(padded.reshape(B, nb, HOP_SIZE), (0, 2, 1))

    inv_spatial = 1.0 / float(T * MEL_BINS)
    kernel = functools.partial(fused_kernel, T=T, inv_spatial=inv_spatial)

    flops = B * (2 * (2 * FP) * WINDOW_SIZE * T          # STFT
                 + 2 * MEL_BINS * (2 * FP) * T           # mel
                 + 8 * MEL_BINS * T)                     # elementwise
    transcendentals = B * (3 * MEL_BINS * T + 2)
    bytes_accessed = 4 * (hb.size + kp["wric"].size + kp["mel2T"].size
                          + kp["aux"].size + kp["gem_p"].size + B * NC)

    vmem_full = pl.BlockSpec(memory_space=pltpu.MemorySpace.VMEM)

    out = pl.pallas_call(
        kernel,
        grid=(B,),
        out_shape=jax.ShapeDtypeStruct((B, 1, NC), jnp.float32),
        in_specs=[
            pl.BlockSpec(memory_space=pltpu.MemorySpace.SMEM),     # GeM p (1,)
            pl.BlockSpec((1, HOP_SIZE, nb), lambda b: (b, 0, 0)),  # hop blocks
            vmem_full,   # wric   (N_CHUNKS, 2*FP, HOP)  windowed-DFT chunks
            vmem_full,   # mel2T  (M, 2*FP)              stacked mel weights
            vmem_full,   # aux    (M+2, >=NC)            bn scale/shift + head
        ],
        out_specs=pl.BlockSpec((1, 1, NC), lambda b: (b, 0, 0)),
        compiler_params=pltpu.CompilerParams(
            dimension_semantics=("parallel",)),
        cost_estimate=pl.CostEstimate(flops=flops,
                                      transcendentals=transcendentals,
                                      bytes_accessed=bytes_accessed),
    )(kp["gem_p"], hb, kp["wric"], kp["mel2T"], kp["aux"])
    return out.reshape(B, NC)


def prepare_kernel_params(raw):
    """Fold/pack the module parameters into kernel-friendly buffers."""
    F = WINDOW_SIZE // 2 + 1
    wr = np.asarray(raw["wr"])
    wi = np.asarray(raw["wi"])
    melw = np.asarray(raw["melw"])

    # Transposed, lane-padded [wr ; wi] weight (2*FP, n_fft), split into hop
    # chunks so the kernel's 4 shifted matmuls need no unaligned weight slices.
    wriT = np.zeros((2 * FP, WINDOW_SIZE), np.float32)
    wriT[:F, :] = wr.T
    wriT[FP:FP + F, :] = wi.T
    wric = np.zeros((N_CHUNKS, 2 * FP, HOP_SIZE), np.float32)
    for j in range(N_CHUNKS):
        wric[j] = wriT[:, j * HOP_SIZE:(j + 1) * HOP_SIZE]

    # Stacked mel weights: power @ melW == (riT*riT) contracted with mel2T.
    mel2T = np.zeros((MEL_BINS, 2 * FP), np.float32)
    mel2T[:, :F] = melw.T
    mel2T[:, FP:FP + F] = melw.T

    # Eval-mode BatchNorm2d(mel_bins) folded to per-mel scale/shift, with the
    # power_to_db 10/ln(10) factor folded into the scale.
    gamma = np.asarray(raw["bn_gamma"], np.float64)
    beta = np.asarray(raw["bn_beta"], np.float64)
    mean = np.asarray(raw["bn_mean"], np.float64)
    var = np.asarray(raw["bn_var"], np.float64)
    s = gamma / np.sqrt(var + BN_EPS)
    scale = LOG10_SCALE * s
    shift = beta - mean * s

    # Single consolidated small-constant buffer (one DMA instead of four):
    #   rows 0..M-1 : col 0 = folded bn scale, col 1 = folded bn shift
    #   row  M      : linear weight (n_features == 1)
    #   row  M+1    : linear bias
    ncol = max(NUM_CLASSES, 2)
    aux = np.zeros((MEL_BINS + 2, ncol), np.float32)
    aux[:MEL_BINS, 0] = scale
    aux[:MEL_BINS, 1] = shift
    aux[MEL_BINS, :NUM_CLASSES] = np.asarray(raw["lin_w"])[:, 0]
    aux[MEL_BINS + 1, :NUM_CLASSES] = np.asarray(raw["lin_b"])

    return {
        "wric": jnp.asarray(wric),
        "mel2T": jnp.asarray(mel2T),
        "aux": jnp.asarray(aux),
        "gem_p": jnp.asarray(raw["gem_p"], dtype=jnp.float32).reshape(1),
    }


# ------------------------------ pure-JAX reference ---------------------------
def reference_forward(wave, raw):
    n_fft = WINDOW_SIZE
    hi = jax.lax.Precision.HIGHEST
    padded = jnp.pad(wave, ((0, 0), (n_fft // 2, n_fft // 2)), mode="reflect")
    T = wave.shape[1] // HOP_SIZE + 1
    idx = np.arange(T)[:, None] * HOP_SIZE + np.arange(n_fft)[None, :]
    frames = padded[:, idx]                                       # (B, T, n_fft)
    real = jnp.einsum("btn,nf->btf", frames, raw["wr"], precision=hi)
    imag = jnp.einsum("btn,nf->btf", frames, raw["wi"], precision=hi)
    power = real ** 2 + imag ** 2
    mel = jnp.einsum("btf,fm->btm", power, raw["melw"], precision=hi)
    logmel = 10.0 * jnp.log10(jnp.maximum(mel, AMIN))
    s = raw["bn_gamma"] / jnp.sqrt(raw["bn_var"] + BN_EPS)
    x = logmel * s + (raw["bn_beta"] - raw["bn_mean"] * s)        # (B, T, M)
    feat = x[:, None, :, :]                                       # identity backbone
    p = raw["gem_p"][0]
    xc = jnp.clip(feat, GEM_EPS, None)
    pooled = jnp.mean(xc ** p, axis=(2, 3)) ** (1.0 / p)          # (B, 1)
    # Linear with n_features == 1 (elementwise to stay exact in f32).
    return pooled * raw["lin_w"][:, 0][None, :] + raw["lin_b"][None, :]


# ----------------------------------- main ------------------------------------
if __name__ == "__main__":
    key = jax.random.PRNGKey(0)
    k_wave, k_lin = jax.random.split(key)

    wr_np, wi_np = stft_matrices(WINDOW_SIZE)                     # (n_fft, F)
    melw_np = mel_filterbank(SAMPLE_RATE, WINDOW_SIZE, MEL_BINS, FMIN, FMAX)

    # Linear(n_features, num_classes) with xavier_uniform weight, zero bias;
    # identity backbone -> n_features == in_chans == 1.
    n_features = CHANNELS
    bound = float(np.sqrt(6.0 / (n_features + NUM_CLASSES)))
    lin_w = jax.random.uniform(k_lin, (NUM_CLASSES, n_features),
                               minval=-bound, maxval=bound, dtype=jnp.float32)

    raw = {
        "wr": jnp.asarray(wr_np),
        "wi": jnp.asarray(wi_np),
        "melw": jnp.asarray(melw_np),
        # bn0 = BatchNorm2d(mel_bins), init_bn (weight=1, bias=0), eval stats.
        "bn_gamma": jnp.ones((MEL_BINS,), jnp.float32),
        "bn_beta": jnp.zeros((MEL_BINS,), jnp.float32),
        "bn_mean": jnp.zeros((MEL_BINS,), jnp.float32),
        "bn_var": jnp.ones((MEL_BINS,), jnp.float32),
        "gem_p": jnp.full((1,), GEM_P, dtype=jnp.float32),
        "lin_w": lin_w,
        "lin_b": jnp.zeros((NUM_CLASSES,), jnp.float32),
    }
    kp = prepare_kernel_params(raw)

    wave = 8.0 * jax.random.normal(k_wave, (BATCH, AUDIO_LEN), dtype=jnp.float32)

    out = jax.jit(effv2_gem_forward)(wave, kp)
    out = jax.block_until_ready(out)

    ref = jax.block_until_ready(reference_forward(wave, raw))
    np.testing.assert_allclose(np.asarray(out), np.asarray(ref),
                               rtol=1e-4, atol=1e-4)
    assert out.shape == (BATCH, NUM_CLASSES)

    print("KERNEL_OK")
</pallas_src>

<mosaic_0001>
module attributes {stable_mosaic.version = 11 : i64} {
  func.func @fused_kernel(%arg0: i32, %arg1: memref<1xf32, #tpu.memory_space<smem>>, %arg2: memref<1x16x68xf32, #tpu.memory_space<vmem>>, %arg3: memref<4x128x16xf32, #tpu.memory_space<vmem>>, %arg4: memref<8x128xf32, #tpu.memory_space<vmem>>, %arg5: memref<10x10xf32, #tpu.memory_space<vmem>>, %arg6: memref<1x1x10xf32, #tpu.memory_space<vmem>>) attributes {dimension_semantics = [#tpu.dimension_semantics<parallel>], iteration_bounds = array<i64: 2>, scalar_prefetch = 0 : i64, scratch_operands = 0 : i64, tpu.core_type = #tpu.core_type<tc>, window_params = [{transform_indices = @transform_0, window_bounds = array<i64: 1>}, {transform_indices = @transform_1, window_bounds = array<i64: 1, 16, 68>}, {pipeline_mode = #tpu.pipeline_mode<synchronous>, transform_indices = @transform_2, window_bounds = array<i64: 4, 128, 16>}, {pipeline_mode = #tpu.pipeline_mode<synchronous>, transform_indices = @transform_3, window_bounds = array<i64: 8, 128>}, {pipeline_mode = #tpu.pipeline_mode<synchronous>, transform_indices = @transform_4, window_bounds = array<i64: 10, 10>}, {transform_indices = @transform_5, window_bounds = array<i64: 1, 1, 10>}]} {
    %c0 = arith.constant 0 : index
    %c0_0 = arith.constant 0 : index
    %c0_1 = arith.constant 0 : index
    %0 = vector.load %arg2[%c0, %c0_0, %c0_1] : memref<1x16x68xf32, #tpu.memory_space<vmem>>, vector<1x16x68xf32>
    %1 = vector.shape_cast %0 : vector<1x16x68xf32> to vector<16x68xf32>
    %c0_2 = arith.constant 0 : index
    %c0_3 = arith.constant 0 : index
    %c0_4 = arith.constant 0 : index
    %2 = vector.load %arg3[%c0_2, %c0_3, %c0_4] : memref<4x128x16xf32, #tpu.memory_space<vmem>>, vector<1x128x16xf32>
    %3 = vector.shape_cast %2 : vector<1x128x16xf32> to vector<128x16xf32>
    %4 = vector.extract_strided_slice %1 {offsets = [0, 0], sizes = [16, 65], strides = [1, 1]} : vector<16x68xf32> to vector<16x65xf32>
    %cst = arith.constant dense<0.000000e+00> : vector<128x65xf32>
    %5 = tpu.matmul %3, %4, %cst {dimension_numbers = #tpu.dot_dimension_numbers<[1], [0], [0], [1], [0, 0, 1, 1], [], []>} : vector<128x16xf32>, vector<16x65xf32>, vector<128x65xf32> -> vector<128x65xf32>
    %c1 = arith.constant 1 : index
    %c0_5 = arith.constant 0 : index
    %c0_6 = arith.constant 0 : index
    %6 = vector.load %arg3[%c1, %c0_5, %c0_6] : memref<4x128x16xf32, #tpu.memory_space<vmem>>, vector<1x128x16xf32>
    %7 = vector.shape_cast %6 : vector<1x128x16xf32> to vector<128x16xf32>
    %8 = vector.extract_strided_slice %1 {offsets = [0, 1], sizes = [16, 65], strides = [1, 1]} : vector<16x68xf32> to vector<16x65xf32>
    %cst_7 = arith.constant dense<0.000000e+00> : vector<128x65xf32>
    %9 = tpu.matmul %7, %8, %cst_7 {dimension_numbers = #tpu.dot_dimension_numbers<[1], [0], [0], [1], [0, 0, 1, 1], [], []>} : vector<128x16xf32>, vector<16x65xf32>, vector<128x65xf32> -> vector<128x65xf32>
    %10 = arith.addf %5, %9 : vector<128x65xf32>
    %c2 = arith.constant 2 : index
    %c0_8 = arith.constant 0 : index
    %c0_9 = arith.constant 0 : index
    %11 = vector.load %arg3[%c2, %c0_8, %c0_9] : memref<4x128x16xf32, #tpu.memory_space<vmem>>, vector<1x128x16xf32>
    %12 = vector.shape_cast %11 : vector<1x128x16xf32> to vector<128x16xf32>
    %13 = vector.extract_strided_slice %1 {offsets = [0, 2], sizes = [16, 65], strides = [1, 1]} : vector<16x68xf32> to vector<16x65xf32>
    %cst_10 = arith.constant dense<0.000000e+00> : vector<128x65xf32>
    %14 = tpu.matmul %12, %13, %cst_10 {dimension_numbers = #tpu.dot_dimension_numbers<[1], [0], [0], [1], [0, 0, 1, 1], [], []>} : vector<128x16xf32>, vector<16x65xf32>, vector<128x65xf32> -> vector<128x65xf32>
    %15 = arith.addf %10, %14 : vector<128x65xf32>
    %c3 = arith.constant 3 : index
    %c0_11 = arith.constant 0 : index
    %c0_12 = arith.constant 0 : index
    %16 = vector.load %arg3[%c3, %c0_11, %c0_12] : memref<4x128x16xf32, #tpu.memory_space<vmem>>, vector<1x128x16xf32>
    %17 = vector.shape_cast %16 : vector<1x128x16xf32> to vector<128x16xf32>
    %18 = vector.extract_strided_slice %1 {offsets = [0, 3], sizes = [16, 65], strides = [1, 1]} : vector<16x68xf32> to vector<16x65xf32>
    %cst_13 = arith.constant dense<0.000000e+00> : vector<128x65xf32>
    %19 = tpu.matmul %17, %18, %cst_13 {dimension_numbers = #tpu.dot_dimension_numbers<[1], [0], [0], [1], [0, 0, 1, 1], [], []>} : vector<128x16xf32>, vector<16x65xf32>, vector<128x65xf32> -> vector<128x65xf32>
    %20 = arith.addf %15, %19 : vector<128x65xf32>
    %21 = arith.mulf %20, %20 : vector<128x65xf32>
    %c0_14 = arith.constant 0 : index
    %c0_15 = arith.constant 0 : index
    %22 = vector.load %arg4[%c0_14, %c0_15] : memref<8x128xf32, #tpu.memory_space<vmem>>, vector<8x128xf32>
    %cst_16 = arith.constant dense<0.000000e+00> : vector<8x65xf32>
    %23 = tpu.matmul %22, %21, %cst_16 {dimension_numbers = #tpu.dot_dimension_numbers<[1], [0], [0], [1], [0, 0, 1, 1], [], []>} : vector<8x128xf32>, vector<128x65xf32>, vector<8x65xf32> -> vector<8x65xf32>
    %c0_17 = arith.constant 0 : index
    %c0_18 = arith.constant 0 : index
    %24 = vector.load %arg5[%c0_17, %c0_18] : memref<10x10xf32, #tpu.memory_space<vmem>>, vector<8x1xf32>
    %c0_19 = arith.constant 0 : index
    %c1_20 = arith.constant 1 : index
    %25 = vector.load %arg5[%c0_19, %c1_20] : memref<10x10xf32, #tpu.memory_space<vmem>>, vector<8x1xf32>
    %cst_21 = arith.constant 1.000000e-10 : f32
    %26 = vector.broadcast %cst_21 : f32 to vector<8x65xf32>
    %27 = arith.maximumf %23, %26 : vector<8x65xf32>
    %28 = math.log %27 : vector<8x65xf32>
    %29 = vector.broadcast %24 : vector<8x1xf32> to vector<8x65xf32>
    %30 = arith.mulf %28, %29 : vector<8x65xf32>
    %31 = vector.broadcast %25 : vector<8x1xf32> to vector<8x65xf32>
    %32 = arith.addf %30, %31 : vector<8x65xf32>
    %c0_22 = arith.constant 0 : index
    %33 = memref.load %arg1[%c0_22] : memref<1xf32, #tpu.memory_space<smem>>
    %cst_23 = arith.constant 9.99999997E-7 : f32
    %34 = vector.broadcast %cst_23 : f32 to vector<8x65xf32>
    %35 = arith.maximumf %32, %34 : vector<8x65xf32>
    %36 = math.log %35 : vector<8x65xf32>
    %37 = vector.broadcast %33 : f32 to vector<8x65xf32>
    %38 = arith.mulf %37, %36 : vector<8x65xf32>
    %39 = math.exp %38 : vector<8x65xf32>
    %cst_24 = arith.constant dense<0.000000e+00> : vector<8xf32>
    %40 = vector.multi_reduction <add>, %39, %cst_24 [1] : vector<8x65xf32> to vector<8xf32>
    %41 = vector.shape_cast %40 : vector<8xf32> to vector<8x1xf32>
    %cst_25 = arith.constant dense<0.000000e+00> : vector<1xf32>
    %42 = vector.multi_reduction <add>, %41, %cst_25 [0] : vector<8x1xf32> to vector<1xf32>
    %43 = vector.shape_cast %42 : vector<1xf32> to vector<1x1xf32>
    %cst_26 = arith.constant 0.00192307692 : f32
    %44 = vector.broadcast %cst_26 : f32 to vector<1x1xf32>
    %45 = arith.mulf %43, %44 : vector<1x1xf32>
    %46 = math.log %45 : vector<1x1xf32>
    %47 = vector.broadcast %33 : f32 to vector<1x1xf32>
    %48 = arith.divf %46, %47 : vector<1x1xf32>
    %49 = math.exp %48 : vector<1x1xf32>
    %c8 = arith.constant 8 : index
    %c0_27 = arith.constant 0 : index
    %50 = vector.load %arg5[%c8, %c0_27] : memref<10x10xf32, #tpu.memory_space<vmem>>, vector<1x10xf32>
    %c9 = arith.constant 9 : index
    %c0_28 = arith.constant 0 : index
    %51 = vector.load %arg5[%c9, %c0_28] : memref<10x10xf32, #tpu.memory_space<vmem>>, vector<1x10xf32>
    %52 = vector.broadcast %49 : vector<1x1xf32> to vector<1x10xf32>
    %53 = arith.mulf %52, %50 : vector<1x10xf32>
    %54 = arith.addf %53, %51 : vector<1x10xf32>
    %c0_29 = arith.constant 0 : index
    %c0_30 = arith.constant 0 : index
    %c0_31 = arith.constant 0 : index
    %55 = vector.load %arg6[%c0_29, %c0_30, %c0_31] : memref<1x1x10xf32, #tpu.memory_space<vmem>>, vector<1x1x10xf32>
    %56 = vector.shape_cast %55 : vector<1x1x10xf32> to vector<1x10xf32>
    %57 = vector.shape_cast %54 : vector<1x10xf32> to vector<1x1x10xf32>
    tpu.vector_store %arg6[%c0_29, %c0_30, %c0_31], %57 {strides = array<i32>} : memref<1x1x10xf32, #tpu.memory_space<vmem>>, vector<1x1x10xf32>,
    return
  }
  func.func @transform_0(%arg0: i32) -> i32 {
    %c0_i32 = arith.constant 0 : i32
    %c0_i32_0 = arith.constant 0 : i32
    return %c0_i32 : i32
  }
  func.func @transform_1(%arg0: i32) -> (i32, i32, i32) {
    %c0_i32 = arith.constant 0 : i32
    %c0_i32_0 = arith.constant 0 : i32
    %c0_i32_1 = arith.constant 0 : i32
    return %arg0, %c0_i32, %c0_i32_0 : i32, i32, i32
  }
  func.func @transform_2(%arg0: i32) -> (i32, i32, i32) {
    %c0_i32 = arith.constant 0 : i32
    %c0_i32_0 = arith.constant 0 : i32
    %c0_i32_1 = arith.constant 0 : i32
    %c0_i32_2 = arith.constant 0 : i32
    return %c0_i32, %c0_i32_0, %c0_i32_1 : i32, i32, i32
  }
  func.func @transform_3(%arg0: i32) -> (i32, i32) {
    %c0_i32 = arith.constant 0 : i32
    %c0_i32_0 = arith.constant 0 : i32
    %c0_i32_1 = arith.constant 0 : i32
    return %c0_i32, %c0_i32_0 : i32, i32
  }
  func.func @transform_4(%arg0: i32) -> (i32, i32) {
    %c0_i32 = arith.constant 0 : i32
    %c0_i32_0 = arith.constant 0 : i32
    %c0_i32_1 = arith.constant 0 : i32
    return %c0_i32, %c0_i32_0 : i32, i32
  }
  func.func @transform_5(%arg0: i32) -> (i32, i32, i32) {
    %c0_i32 = arith.constant 0 : i32
    %c0_i32_0 = arith.constant 0 : i32
    %c0_i32_1 = arith.constant 0 : i32
    return %arg0, %c0_i32, %c0_i32_0 : i32, i32, i32
  }
}

</mosaic_0001>

<llo_original>
// kernel: effv2_gem_forward.1
$region0: #{effv2_gem_forward.1}
  #allocation0 [shape = 'u32[]', space=smem, size = 0x4, offset = 0x4, fixed_abs, tag = 'smem constant byte address 0x4 - core index']
  #allocation1 [shape = 'u32[144,128]{1,0:T(1,128)}', space=vmem, size = 0x12000, scoped, tag = 'internal scratch']
  #allocation2 [shape = 'f32[1]{0:T(128)S(6)}', space=smem, size = 0x200, scoped, tag = 'scoped memory for effv2_gem_forward.1']
  %s0 = inlined_call_operand.<no memory space> [shape: f32[1], index: 0, kind: input, shape index: {}]
  %s1 = inlined_call_operand.vmem [shape: f32[2,16,68], index: 1, kind: input, shape index: {}]
  %s2 = inlined_call_operand.vmem [shape: f32[4,128,16], index: 2, kind: input, shape index: {}]
  %s3 = inlined_call_operand.vmem [shape: f32[8,128], index: 3, kind: input, shape index: {}]
  %s4 = inlined_call_operand.vmem [shape: f32[10,10], index: 4, kind: input, shape index: {}]
  %s5 = inlined_call_operand.hbm [shape: f32[2,1,10], index: 5, kind: output, shape index: {}]
  %s6 = sld [smem:[#allocation0]]
  $region53: #{effv2_gem_forward.1} parent=0
    _
  %s8 = ssub.s32 1, %s6
  %s9 = scalar_select 0, %s8, %s6
  %10 = sst [smem:[#allocation2]] %s0
  $region1: #{effv2_gem_forward.1} parent=0
    #allocation3 [shape = 'u8[1024]{0}', space=vmem, size = 0x400, scoped, tag = 'output window, operand 0']
    #allocation4 [shape = 's32[2]{0}', space=sflag, size = 0x8, scoped, tag = 'scoped memory for effv2_gem_forward.1']
    %11 = vsyncpa [#allocation4], 0
    %s12 = scalar_lea.sflag [#allocation4], 1
    %13 = vsyncpa %s12, 0
    loop: start=0, step=1, limit=4
    $region2: #{effv2_gem_forward.1} parent=1 // loop_pre_header
      _
    $region3: #{effv2_gem_forward.1} parent=1 // loop_header
      %s15 = sphi 0, %s19
      %p16 = scmp.ge.s32.totalorder %s15, 4
      %s23 = sphi 0, %s23
      %s25 = sphi 0, %s23
      %s26 = sphi 0, %s25
      %s40 = sphi 0, %s26
      %s46 = sphi 0, %s48
      %s49 = sphi 0, %s46
      %s50 = sphi 0, %s49
      %s66 = sphi 0, %s50
      %s70 = sphi 0, %s70
      %s72 = sphi 0, %s70
      %s73 = sphi 0, %s72
      %s87 = sphi 0, %s73
      %s91 = sphi 0, %s91
      %s93 = sphi 0, %s91
      %s94 = sphi 0, %s93
      %s108 = sphi 0, %s94
      %s112 = sphi 0, %s112
      %s114 = sphi 0, %s112
      %s115 = sphi 0, %s114
      %s129 = sphi 0, %s115
      %s135 = sphi 0, %s137
      %s138 = sphi 0, %s135
      %s139 = sphi 0, %s138
      %s155 = sphi 0, %s139
    $region4: #{effv2_gem_forward.1} parent=1 // loop_header_branch
      %18 = sbr.rel (%p16) target = $region8
    $region5: #{effv2_gem_forward.1} parent=1 // loop_body
      %s20 = ssub.s32 %s15, 1
      %s21 = ssub.s32 %s15, 2
      %s22 = sadd.s32 %s15, 1
      %s24 = sadd.s32 %s23, 1
      %p27 = scmp.eq.s32.totalorder %s15, 1
      %p28 = scmp.ne.s32.totalorder %s23, %s25
      %p29 = scmp.eq.s32.totalorder %s15, 0
      %p30 = por %p28, %p29
      %p31 = scmp.ne.s32.totalorder %s23, %s25
      %p32 = scmp.eq.s32.totalorder %s20, 1
      %p33 = por %p31, %p32
      %p34 = scmp.ne.s32.totalorder %s25, %s26
      %p35 = scmp.eq.s32.totalorder %s20, 0
      %p36 = por %p34, %p35
      %p37 = scmp.ne.s32.totalorder %s25, %s26
      %p38 = scmp.eq.s32.totalorder %s21, 1
      %p39 = por %p37, %p38
      %p41 = scmp.ne.s32.totalorder %s26, %s40
      %p42 = scmp.eq.s32.totalorder %s21, 0
      %p43 = por %p41, %p42
      %s44 = ssub.s32 %s15, %s22
      %p45 = scmp.eq.s32.totalorder %s44, 0
      %s47 = sadd.s32 %s46, 1
      %s48 = scalar_select %p45, %s46, %s47
      %p51 = pneg %p45
      %p52 = scmp.eq.s32.totalorder %s15, 1
      %p53 = por %p51, %p52
      %p54 = scmp.ne.s32.totalorder %s46, %s49
      %p55 = scmp.eq.s32.totalorder %s15, 0
      %p56 = por %p54, %p55
      %p57 = scmp.ne.s32.totalorder %s46, %s49
      %p58 = scmp.eq.s32.totalorder %s20, 1
      %p59 = por %p57, %p58
      %p60 = scmp.ne.s32.totalorder %s49, %s50
      %p61 = scmp.eq.s32.totalorder %s20, 0
      %p62 = por %p60, %p61
      %p63 = scmp.ne.s32.totalorder %s49, %s50
      %p64 = scmp.eq.s32.totalorder %s21, 1
      %p65 = por %p63, %p64
      %p67 = scmp.ne.s32.totalorder %s50, %s66
      %p68 = scmp.eq.s32.totalorder %s21, 0
      %p69 = por %p67, %p68
      %s71 = sadd.s32 %s70, 1
      %p74 = scmp.eq.s32.totalorder %s15, 1
      %p75 = scmp.ne.s32.totalorder %s70, %s72
      %p76 = scmp.eq.s32.totalorder %s15, 0
      %p77 = por %p75, %p76
      %p78 = scmp.ne.s32.totalorder %s70, %s72
      %p79 = scmp.eq.s32.totalorder %s20, 1
      %p80 = por %p78, %p79
      %p81 = scmp.ne.s32.totalorder %s72, %s73
      %p82 = scmp.eq.s32.totalorder %s20, 0
      %p83 = por %p81, %p82
      %p84 = scmp.ne.s32.totalorder %s72, %s73
      %p85 = scmp.eq.s32.totalorder %s21, 1
      %p86 = por %p84, %p85
      %p88 = scmp.ne.s32.totalorder %s73, %s87
      %p89 = scmp.eq.s32.totalorder %s21, 0
      %p90 = por %p88, %p89
      %s92 = sadd.s32 %s91, 1
      %p95 = scmp.eq.s32.totalorder %s15, 1
      %p96 = scmp.ne.s32.totalorder %s91, %s93
      %p97 = scmp.eq.s32.totalorder %s15, 0
      %p98 = por %p96, %p97
      %p99 = scmp.ne.s32.totalorder %s91, %s93
      %p100 = scmp.eq.s32.totalorder %s20, 1
      %p101 = por %p99, %p100
      %p102 = scmp.ne.s32.totalorder %s93, %s94
      %p103 = scmp.eq.s32.totalorder %s20, 0
      %p104 = por %p102, %p103
      %p105 = scmp.ne.s32.totalorder %s93, %s94
      %p106 = scmp.eq.s32.totalorder %s21, 1
      %p107 = por %p105, %p106
      %p109 = scmp.ne.s32.totalorder %s94, %s108
      %p110 = scmp.eq.s32.totalorder %s21, 0
      %p111 = por %p109, %p110
      %s113 = sadd.s32 %s112, 1
      %p116 = scmp.eq.s32.totalorder %s15, 1
      %p117 = scmp.ne.s32.totalorder %s112, %s114
      %p118 = scmp.eq.s32.totalorder %s15, 0
      %p119 = por %p117, %p118
      %p120 = scmp.ne.s32.totalorder %s112, %s114
      %p121 = scmp.eq.s32.totalorder %s20, 1
      %p122 = por %p120, %p121
      %p123 = scmp.ne.s32.totalorder %s114, %s115
      %p124 = scmp.eq.s32.totalorder %s20, 0
      %p125 = por %p123, %p124
      %p126 = scmp.ne.s32.totalorder %s114, %s115
      %p127 = scmp.eq.s32.totalorder %s21, 1
      %p128 = por %p126, %p127
      %p130 = scmp.ne.s32.totalorder %s115, %s129
      %p131 = scmp.eq.s32.totalorder %s21, 0
      %p132 = por %p130, %p131
      %s133 = ssub.s32 %s15, %s22
      %p134 = scmp.eq.s32.totalorder %s133, 0
      %s136 = sadd.s32 %s135, 1
      %s137 = scalar_select %p134, %s135, %s136
      %p140 = pneg %p134
      %p141 = scmp.eq.s32.totalorder %s15, 1
      %p142 = por %p140, %p141
      %p143 = scmp.ne.s32.totalorder %s135, %s138
      %p144 = scmp.eq.s32.totalorder %s15, 0
      %p145 = por %p143, %p144
      %p146 = scmp.ne.s32.totalorder %s135, %s138
      %p147 = scmp.eq.s32.totalorder %s20, 1
      %p148 = por %p146, %p147
      %p149 = scmp.ne.s32.totalorder %s138, %s139
      %p150 = scmp.eq.s32.totalorder %s20, 0
      %p151 = por %p149, %p150
      %p152 = scmp.ne.s32.totalorder %s138, %s139
      %p153 = scmp.eq.s32.totalorder %s21, 1
      %p154 = por %p152, %p153
      %p156 = scmp.ne.s32.totalorder %s139, %s155
      %p157 = scmp.eq.s32.totalorder %s21, 0
      %p158 = por %p156, %p157
      %p159 = scmp.le.s32.totalorder 1, %s15
      %p160 = scmp.lt.s32.totalorder %s15, 3
      %p161 = pnand %p159, %p160
      %p162 = pneg %p161
      // Predicated region
      $region9: #{effv2_gem_forward.1} parent=5 // pred_check
        _
      $region10: #{effv2_gem_forward.1} parent=5 // pred_check_branch
        %164 = sbr.rel (%p161) target = $region12
      $region11: #{effv2_gem_forward.1} parent=5 // pred_region
        %s165 = ssub.s32 %s15, 1
        // Predicated region
        $region13: #{effv2_gem_forward.1} parent=11 // pred_check
          %p166 = pneg %p36
        $region14: #{effv2_gem_forward.1} parent=11 // pred_check_branch
          %168 = sbr.rel (%p166) target = $region16
        $region15: #{effv2_gem_forward.1} parent=11 // pred_region
          _
        $region16: #{effv2_gem_forward.1} parent=11 // pred_fallthru
          _
        // Predicated region
        $region17: #{effv2_gem_forward.1} parent=11 // pred_check
          %p169 = pneg %p83
        $region18: #{effv2_gem_forward.1} parent=11 // pred_check_branch
          %171 = sbr.rel (%p169) target = $region20
        $region19: #{effv2_gem_forward.1} parent=11 // pred_region
          _
        $region20: #{effv2_gem_forward.1} parent=11 // pred_fallthru
          _
        // Predicated region
        $region21: #{effv2_gem_forward.1} parent=11 // pred_check
          %p172 = pneg %p104
        $region22: #{effv2_gem_forward.1} parent=11 // pred_check_branch
          %174 = sbr.rel (%p172) target = $region24
        $region23: #{effv2_gem_forward.1} parent=11 // pred_region
          _
        $region24: #{effv2_gem_forward.1} parent=11 // pred_fallthru
          _
        // Predicated region
        $region25: #{effv2_gem_forward.1} parent=11 // pred_check
          %p175 = pneg %p125
        $region26: #{effv2_gem_forward.1} parent=11 // pred_check_branch
          %177 = sbr.rel (%p175) target = $region28
        $region27: #{effv2_gem_forward.1} parent=11 // pred_region
          _
        $region28: #{effv2_gem_forward.1} parent=11 // pred_fallthru
          _
      $region12: #{effv2_gem_forward.1} parent=5 // pred_fallthru
        _
      %p178 = scmp.lt.s32.totalorder %s15, 2
      // Predicated region
      $region29: #{effv2_gem_forward.1} parent=5 // pred_check
        %p179 = pneg %p178
      $region30: #{effv2_gem_forward.1} parent=5 // pred_check_branch
        %181 = sbr.rel (%p179) target = $region32
      $region31: #{effv2_gem_forward.1} parent=5 // pred_region
        // Predicated region
        $region33: #{effv2_gem_forward.1} parent=31 // pred_check
          %p182 = pneg %p56
        $region34: #{effv2_gem_forward.1} parent=31 // pred_check_branch
          %184 = sbr.rel (%p182) target = $region36
        $region35: #{effv2_gem_forward.1} parent=31 // pred_region
          %p185 = scmp.lt.s32.totalorder %s15, 1
          %s186 = scalar_select %p185, %s15, 1
          %s187 = smul.addr %s186, 2
          %s188 = smul.addr %s187, 8
          %s189 = scalar_lea.vmem %s1, %s188
        $region36: #{effv2_gem_forward.1} parent=31 // pred_fallthru
          _
      $region32: #{effv2_gem_forward.1} parent=5 // pred_fallthru
        _
      %p190 = scmp.le.s32.totalorder 1, %s15
      %p191 = scmp.lt.s32.totalorder %s15, 3
      %p192 = pnand %p190, %p191
      %p193 = pneg %p192
      // Predicated region
      $region37: #{effv2_gem_forward.1} parent=5 // pred_check
        _
      $region38: #{effv2_gem_forward.1} parent=5 // pred_check_branch
        %195 = sbr.rel (%p192) target = $region40
      $region39: #{effv2_gem_forward.1} parent=5 // pred_region
        %s196 = ssub.s32 %s15, 1
        %p197 = pneg %p36
        %p198 = pneg %p33
        %p199 = scmp.lt.s32.totalorder %s20, 1
        %s200 = scalar_select %p199, %s20, 1
        %s201 = smul.addr %s200, 2
        %s202 = smul.addr %s201, 8
        %s203 = scalar_lea.vmem %s1, %s202
        %p204 = pneg %p62
        %p205 = pneg %p59
        %p206 = pneg %p83
        %p207 = pneg %p80
        %p208 = pneg %p104
        %p209 = pneg %p101
        %p210 = pneg %p125
        %p211 = pneg %p122
        %p212 = pneg %p151
        %p213 = pneg %p148
        %s214 = sand.u32 %s138, 1
        %s215 = scalar_lea.sflag [#allocation4], %s214
        %s216 = sand.u32 %s138, 1
        %s217 = scalar_lea.vmem [#allocation3], %s216
        %p218 = scmp.lt.s32.totalorder %s20, 1
        %s219 = scalar_select %p218, %s20, 1
        %s220 = smul.addr %s219, 2
        %s221 = smul.addr %s220, 8
        %s222 = scalar_lea.vmem %s1, %s221
        %v223 = vld [vmem:[%s222] sm:$0xff]
        %v224 = vld [vmem:[%s222 + $0x8] sm:$0xff]
        %v225 = vld [vmem:[%s2] sm:$0xff]
        %v226 = vld [vmem:[%s2 + $0x8] sm:$0xff]
        %v227 = vld [vmem:[%s2 + $0x10] sm:$0xff]
        %v228 = vld [vmem:[%s2 + $0x18] sm:$0xff]
        %v229 = vld [vmem:[%s2 + $0x20] sm:$0xff]
        %v230 = vld [vmem:[%s2 + $0x28] sm:$0xff]
        %v231 = vld [vmem:[%s2 + $0x30] sm:$0xff]
        %v232 = vld [vmem:[%s2 + $0x38] sm:$0xff]
        %v233 = vld [vmem:[%s2 + $0x40] sm:$0xff]
        %v234 = vld [vmem:[%s2 + $0x48] sm:$0xff]
        %v235 = vld [vmem:[%s2 + $0x50] sm:$0xff]
        %v236 = vld [vmem:[%s2 + $0x58] sm:$0xff]
        %v237 = vld [vmem:[%s2 + $0x60] sm:$0xff]
        %v238 = vld [vmem:[%s2 + $0x68] sm:$0xff]
        %v239 = vld [vmem:[%s2 + $0x70] sm:$0xff]
        %v240 = vld [vmem:[%s2 + $0x78] sm:$0xff]
        %s241 = scalar_lea.vmem %s2, 128
        %v242 = vld [vmem:[%s241] sm:$0xff]
        %v243 = vld [vmem:[%s241 + $0x8] sm:$0xff]
        %v244 = vld [vmem:[%s241 + $0x10] sm:$0xff]
        %v245 = vld [vmem:[%s241 + $0x18] sm:$0xff]
        %v246 = vld [vmem:[%s241 + $0x20] sm:$0xff]
        %v247 = vld [vmem:[%s241 + $0x28] sm:$0xff]
        %v248 = vld [vmem:[%s241 + $0x30] sm:$0xff]
        %v249 = vld [vmem:[%s241 + $0x38] sm:$0xff]
        %v250 = vld [vmem:[%s241 + $0x40] sm:$0xff]
        %v251 = vld [vmem:[%s241 + $0x48] sm:$0xff]
        %v252 = vld [vmem:[%s241 + $0x50] sm:$0xff]
        %v253 = vld [vmem:[%s241 + $0x58] sm:$0xff]
        %v254 = vld [vmem:[%s241 + $0x60] sm:$0xff]
        %v255 = vld [vmem:[%s241 + $0x68] sm:$0xff]
        %v256 = vld [vmem:[%s241 + $0x70] sm:$0xff]
        %v257 = vld [vmem:[%s241 + $0x78] sm:$0xff]
        %260 = vrot.lane.b32.xlu0 %v223, 127
        %v261 = vpop.permute.xlu0 %260
        %262 = vrot.lane.b32.xlu0 %v224, 127
        %v263 = vpop.permute.xlu0 %262
        %vm266 = vcmask 130048
        %v268 = vsel %vm266, %v242, 0
        %v271 = vsel %vm266, %v243, 0
        %v274 = vsel %vm266, %v244, 0
        %v277 = vsel %vm266, %v245, 0
        %v280 = vsel %vm266, %v246, 0
        %v283 = vsel %vm266, %v247, 0
        %v286 = vsel %vm266, %v248, 0
        %v289 = vsel %vm266, %v249, 0
        %v292 = vsel %vm266, %v250, 0
        %v295 = vsel %vm266, %v251, 0
        %v298 = vsel %vm266, %v252, 0
        %v301 = vsel %vm266, %v253, 0
        %v304 = vsel %vm266, %v254, 0
        %v307 = vsel %vm266, %v255, 0
        %v310 = vsel %vm266, %v256, 0
        %v313 = vsel %vm266, %v257, 0
        %315 = vmatprep.subr.mxu0 0.0
        %316 = vmatpush1.msra.mxu0 %v261
        %317 = vmatprep.subr.mxu0 0.0
        %318 = vmatpush1.msra.mxu0 %v263
        %319 = vmatprep.subr.mxu0 0.0
        %320 = vmatpush1.msra.mxu0 0.0
        %321 = vmatprep.subr.mxu0 0.0
        %322 = vmatpush1.msra.mxu0 0.0
        %323 = vmatprep.subr.mxu0 0.0
        %324 = vmatpush1.msra.mxu0 0.0
        %325 = vmatprep.subr.mxu0 0.0
        %326 = vmatpush1.msra.mxu0 0.0
        %327 = vmatprep.subr.mxu0 0.0
        %328 = vmatpush1.msra.mxu0 0.0
        %329 = vmatprep.subr.mxu0 0.0
        %330 = vmatpush1.msra.mxu0 0.0
        %331 = vmatprep.subr.mxu0 0.0
        %332 = vmatpush1.msra.mxu0 0.0
        %333 = vmatprep.subr.mxu0 0.0
        %334 = vmatpush1.msra.mxu0 0.0
        %335 = vmatprep.subr.mxu0 0.0
        %336 = vmatpush1.msra.mxu0 0.0
        %337 = vmatprep.subr.mxu0 0.0
        %338 = vmatpush1.msra.mxu0 0.0
        %339 = vmatprep.subr.mxu0 0.0
        %340 = vmatpush1.msra.mxu0 0.0
        %341 = vmatprep.subr.mxu0 0.0
        %342 = vmatpush1.msra.mxu0 0.0
        %343 = vmatprep.subr.mxu0 0.0
        %344 = vmatpush1.msra.mxu0 0.0
        %345 = vmatprep.subr.mxu0 0.0
        %346 = vmatpush1.msra.mxu0 0.0
        %347 = vmatprep.subr.mxu0 0.0
        %348 = vmatpush1.msra.mxu0 0.0
        %349 = vmatprep.subr.mxu0 0.0
        %350 = vmatpush1.msra.mxu0 0.0
        %351 = vmatprep.subr.mxu0 0.0
        %352 = vmatpush1.msra.mxu0 0.0
        %353 = vmatprep.subr.mxu0 0.0
        %354 = vmatpush1.msra.mxu0 0.0
        %355 = vmatprep.subr.mxu0 0.0
        %356 = vmatpush1.msra.mxu0 0.0
        %357 = vmatprep.subr.mxu0 0.0
        %358 = vmatpush1.msra.mxu0 0.0
        %359 = vmatprep.subr.mxu0 0.0
        %360 = vmatpush1.msra.mxu0 0.0
        %361 = vmatprep.subr.mxu0 0.0
        %362 = vmatpush1.msra.mxu0 0.0
        %363 = vmatprep.subr.mxu0 0.0
        %364 = vmatpush1.msra.mxu0 0.0
        %365 = vmatprep.subr.mxu0 0.0
        %366 = vmatpush1.msra.mxu0 0.0
        %367 = vmatprep.subr.mxu0 0.0
        %368 = vmatpush1.msra.mxu0 0.0
        %369 = vmatprep.subr.mxu0 0.0
        %370 = vmatpush1.msra.mxu0 0.0
        %371 = vmatprep.subr.mxu0 0.0
        %372 = vmatpush1.msra.mxu0 0.0
        %373 = vmatprep.subr.mxu0 0.0
        %374 = vmatpush1.msra.mxu0 0.0
        %375 = vmatprep.subr.mxu0 0.0
        %376 = vmatpush1.msra.mxu0 0.0
        %377 = vmatprep.subr.mxu0 0.0
        %378 = vmatpush1.msra.mxu0 0.0
        %379 = vmatprep.mubr.f32.mxu0 0.0
        %380 = vmatmul.mubr.f32.gmra.mrb[0].mxu0 %v268
        %v381 = vpop.f32.mrb[0].mxu0
        %v382 = vadd.f32 0.0, %v381
        %v383 = vpop.f32.mrb[0].mxu0
        %384 = vmatprep.mubr.f32.mxu0 0.0
        %385 = vmatmul.mubr.f32.gmra.mrb[0].mxu0 %v271
        %v386 = vpop.f32.mrb[0].mxu0
        %v387 = vadd.f32 0.0, %v386
        %v388 = vpop.f32.mrb[0].mxu0
        %389 = vmatprep.mubr.f32.mxu0 0.0
        %390 = vmatmul.mubr.f32.gmra.mrb[0].mxu0 %v274
        %v391 = vpop.f32.mrb[0].mxu0
        %v392 = vadd.f32 0.0, %v391
        %v393 = vpop.f32.mrb[0].mxu0
        %394 = vmatprep.mubr.f32.mxu0 0.0
        %395 = vmatmul.mubr.f32.gmra.mrb[0].mxu0 %v277
        %v396 = vpop.f32.mrb[0].mxu0
        %v397 = vadd.f32 0.0, %v396
        %v398 = vpop.f32.mrb[0].mxu0
        %399 = vmatprep.mubr.f32.mxu0 0.0
        %400 = vmatmul.mubr.f32.gmra.mrb[0].mxu0 %v280
        %v401 = vpop.f32.mrb[0].mxu0
        %v402 = vadd.f32 0.0, %v401
        %v403 = vpop.f32.mrb[0].mxu0
        %404 = vmatprep.mubr.f32.mxu0 0.0
        %405 = vmatmul.mubr.f32.gmra.mrb[0].mxu0 %v283
        %v406 = vpop.f32.mrb[0].mxu0
        %v407 = vadd.f32 0.0, %v406
        %v408 = vpop.f32.mrb[0].mxu0
        %409 = vmatprep.mubr.f32.mxu0 0.0
        %410 = vmatmul.mubr.f32.gmra.mrb[0].mxu0 %v286
        %v411 = vpop.f32.mrb[0].mxu0
        %v412 = vadd.f32 0.0, %v411
        %v413 = vpop.f32.mrb[0].mxu0
        %414 = vmatprep.mubr.f32.mxu0 0.0
        %415 = vmatmul.mubr.f32.gmra.mrb[0].mxu0 %v289
        %v416 = vpop.f32.mrb[0].mxu0
        %v417 = vadd.f32 0.0, %v416
        %v418 = vpop.f32.mrb[0].mxu0
        %419 = vmatprep.mubr.f32.mxu0 0.0
        %420 = vmatmul.mubr.f32.gmra.mrb[0].mxu0 %v292
        %v421 = vpop.f32.mrb[0].mxu0
        %v422 = vadd.f32 0.0, %v421
        %v423 = vpop.f32.mrb[0].mxu0
        %424 = vmatprep.mubr.f32.mxu0 0.0
        %425 = vmatmul.mubr.f32.gmra.mrb[0].mxu0 %v295
        %v426 = vpop.f32.mrb[0].mxu0
        %v427 = vadd.f32 0.0, %v426
        %v428 = vpop.f32.mrb[0].mxu0
        %429 = vmatprep.mubr.f32.mxu0 0.0
        %430 = vmatmul.mubr.f32.gmra.mrb[0].mxu0 %v298
        %v431 = vpop.f32.mrb[0].mxu0
        %v432 = vadd.f32 0.0, %v431
        %v433 = vpop.f32.mrb[0].mxu0
        %434 = vmatprep.mubr.f32.mxu0 0.0
        %435 = vmatmul.mubr.f32.gmra.mrb[0].mxu0 %v301
        %v436 = vpop.f32.mrb[0].mxu0
        %v437 = vadd.f32 0.0, %v436
        %v438 = vpop.f32.mrb[0].mxu0
        %439 = vmatprep.mubr.f32.mxu0 0.0
        %440 = vmatmul.mubr.f32.gmra.mrb[0].mxu0 %v304
        %v441 = vpop.f32.mrb[0].mxu0
        %v442 = vadd.f32 0.0, %v441
        %v443 = vpop.f32.mrb[0].mxu0
        %444 = vmatprep.mubr.f32.mxu0 0.0
        %445 = vmatmul.mubr.f32.gmra.mrb[0].mxu0 %v307
        %v446 = vpop.f32.mrb[0].mxu0
        %v447 = vadd.f32 0.0, %v446
        %v448 = vpop.f32.mrb[0].mxu0
        %449 = vmatprep.mubr.f32.mxu0 0.0
        %450 = vmatmul.mubr.f32.gmra.mrb[0].mxu0 %v310
        %v451 = vpop.f32.mrb[0].mxu0
        %v452 = vadd.f32 0.0, %v451
        %v453 = vpop.f32.mrb[0].mxu0
        %454 = vmatprep.mubr.f32.mxu0 0.0
        %455 = vmatmul.mubr.f32.gmra.mrb[0].mxu0 %v313
        %v456 = vpop.f32.mrb[0].mxu0
        %v457 = vadd.f32 0.0, %v456
        %v458 = vpop.f32.mrb[0].mxu0
        %459 = vdwg.mxu0
        %v461 = vsel %vm266, %v225, 0
        %v464 = vsel %vm266, %v226, 0
        %v467 = vsel %vm266, %v227, 0
        %v470 = vsel %vm266, %v228, 0
        %v473 = vsel %vm266, %v229, 0
        %v476 = vsel %vm266, %v230, 0
        %v479 = vsel %vm266, %v231, 0
        %v482 = vsel %vm266, %v232, 0
        %v485 = vsel %vm266, %v233, 0
        %v488 = vsel %vm266, %v234, 0
        %v491 = vsel %vm266, %v235, 0
        %v494 = vsel %vm266, %v236, 0
        %v497 = vsel %vm266, %v237, 0
        %v500 = vsel %vm266, %v238, 0
        %v503 = vsel %vm266, %v239, 0
        %v506 = vsel %vm266, %v240, 0
        %508 = vmatprep.subr.mxu0 0.0
        %509 = vmatpush1.msra.mxu0 %v223
        %510 = vmatprep.subr.mxu0 0.0
        %511 = vmatpush1.msra.mxu0 %v224
        %512 = vmatprep.subr.mxu0 0.0
        %513 = vmatpush1.msra.mxu0 0.0
        %514 = vmatprep.subr.mxu0 0.0
        %515 = vmatpush1.msra.mxu0 0.0
        %516 = vmatprep.subr.mxu0 0.0
        %517 = vmatpush1.msra.mxu0 0.0
        %518 = vmatprep.subr.mxu0 0.0
        %519 = vmatpush1.msra.mxu0 0.0
        %520 = vmatprep.subr.mxu0 0.0
        %521 = vmatpush1.msra.mxu0 0.0
        %522 = vmatprep.subr.mxu0 0.0
        %523 = vmatpush1.msra.mxu0 0.0
        %524 = vmatprep.subr.mxu0 0.0
        %525 = vmatpush1.msra.mxu0 0.0
        %526 = vmatprep.subr.mxu0 0.0
        %527 = vmatpush1.msra.mxu0 0.0
        %528 = vmatprep.subr.mxu0 0.0
        %529 = vmatpush1.msra.mxu0 0.0
        %530 = vmatprep.subr.mxu0 0.0
        %531 = vmatpush1.msra.mxu0 0.0
        %532 = vmatprep.subr.mxu0 0.0
        %533 = vmatpush1.msra.mxu0 0.0
        %534 = vmatprep.subr.mxu0 0.0
        %535 = vmatpush1.msra.mxu0 0.0
        %536 = vmatprep.subr.mxu0 0.0
        %537 = vmatpush1.msra.mxu0 0.0
        %538 = vmatprep.subr.mxu0 0.0
        %539 = vmatpush1.msra.mxu0 0.0
        %540 = vmatprep.subr.mxu0 0.0
        %541 = vmatpush1.msra.mxu0 0.0
        %542 = vmatprep.subr.mxu0 0.0
        %543 = vmatpush1.msra.mxu0 0.0
        %544 = vmatprep.subr.mxu0 0.0
        %545 = vmatpush1.msra.mxu0 0.0
        %546 = vmatprep.subr.mxu0 0.0
        %547 = vmatpush1.msra.mxu0 0.0
        %548 = vmatprep.subr.mxu0 0.0
        %549 = vmatpush1.msra.mxu0 0.0
        %550 = vmatprep.subr.mxu0 0.0
        %551 = vmatpush1.msra.mxu0 0.0
        %552 = vmatprep.subr.mxu0 0.0
        %553 = vmatpush1.msra.mxu0 0.0
        %554 = vmatprep.subr.mxu0 0.0
        %555 = vmatpush1.msra.mxu0 0.0
        %556 = vmatprep.subr.mxu0 0.0
        %557 = vmatpush1.msra.mxu0 0.0
        %558 = vmatprep.subr.mxu0 0.0
        %559 = vmatpush1.msra.mxu0 0.0
        %560 = vmatprep.subr.mxu0 0.0
        %561 = vmatpush1.msra.mxu0 0.0
        %562 = vmatprep.subr.mxu0 0.0
        %563 = vmatpush1.msra.mxu0 0.0
        %564 = vmatprep.subr.mxu0 0.0
        %565 = vmatpush1.msra.mxu0 0.0
        %566 = vmatprep.subr.mxu0 0.0
        %567 = vmatpush1.msra.mxu0 0.0
        %568 = vmatprep.subr.mxu0 0.0
        %569 = vmatpush1.msra.mxu0 0.0
        %570 = vmatprep.subr.mxu0 0.0
        %571 = vmatpush1.msra.mxu0 0.0
        %572 = vmatprep.mubr.f32.mxu0 0.0
        %573 = vmatmul.mubr.f32.gmra.mrb[0].mxu0 %v461
        %v574 = vpop.f32.mrb[0].mxu0
        %v575 = vadd.f32 %v382, %v574
        %v576 = vpop.f32.mrb[0].mxu0
        %577 = vmatprep.mubr.f32.mxu0 0.0
        %578 = vmatmul.mubr.f32.gmra.mrb[0].mxu0 %v464
        %v579 = vpop.f32.mrb[0].mxu0
        %v580 = vadd.f32 %v387, %v579
        %v581 = vpop.f32.mrb[0].mxu0
        %582 = vmatprep.mubr.f32.mxu0 0.0
        %583 = vmatmul.mubr.f32.gmra.mrb[0].mxu0 %v467
        %v584 = vpop.f32.mrb[0].mxu0
        %v585 = vadd.f32 %v392, %v584
        %v586 = vpop.f32.mrb[0].mxu0
        %587 = vmatprep.mubr.f32.mxu0 0.0
        %588 = vmatmul.mubr.f32.gmra.mrb[0].mxu0 %v470
        %v589 = vpop.f32.mrb[0].mxu0
        %v590 = vadd.f32 %v397, %v589
        %v591 = vpop.f32.mrb[0].mxu0
        %592 = vmatprep.mubr.f32.mxu0 0.0
        %593 = vmatmul.mubr.f32.gmra.mrb[0].mxu0 %v473
        %v594 = vpop.f32.mrb[0].mxu0
        %v595 = vadd.f32 %v402, %v594
        %v596 = vpop.f32.mrb[0].mxu0
        %597 = vmatprep.mubr.f32.mxu0 0.0
        %598 = vmatmul.mubr.f32.gmra.mrb[0].mxu0 %v476
        %v599 = vpop.f32.mrb[0].mxu0
        %v600 = vadd.f32 %v407, %v599
        %v601 = vpop.f32.mrb[0].mxu0
        %602 = vmatprep.mubr.f32.mxu0 0.0
        %603 = vmatmul.mubr.f32.gmra.mrb[0].mxu0 %v479
        %v604 = vpop.f32.mrb[0].mxu0
        %v605 = vadd.f32 %v412, %v604
        %v606 = vpop.f32.mrb[0].mxu0
        %607 = vmatprep.mubr.f32.mxu0 0.0
        %608 = vmatmul.mubr.f32.gmra.mrb[0].mxu0 %v482
        %v609 = vpop.f32.mrb[0].mxu0
        %v610 = vadd.f32 %v417, %v609
        %v611 = vpop.f32.mrb[0].mxu0
        %612 = vmatprep.mubr.f32.mxu0 0.0
        %613 = vmatmul.mubr.f32.gmra.mrb[0].mxu0 %v485
        %v614 = vpop.f32.mrb[0].mxu0
        %v615 = vadd.f32 %v422, %v614
        %v616 = vpop.f32.mrb[0].mxu0
        %617 = vmatprep.mubr.f32.mxu0 0.0
        %618 = vmatmul.mubr.f32.gmra.mrb[0].mxu0 %v488
        %v619 = vpop.f32.mrb[0].mxu0
        %v620 = vadd.f32 %v427, %v619
        %v621 = vpop.f32.mrb[0].mxu0
        %622 = vmatprep.mubr.f32.mxu0 0.0
        %623 = vmatmul.mubr.f32.gmra.mrb[0].mxu0 %v491
        %v624 = vpop.f32.mrb[0].mxu0
        %v625 = vadd.f32 %v432, %v624
        %v626 = vpop.f32.mrb[0].mxu0
        %627 = vmatprep.mubr.f32.mxu0 0.0
        %628 = vmatmul.mubr.f32.gmra.mrb[0].mxu0 %v494
        %v629 = vpop.f32.mrb[0].mxu0
        %v630 = vadd.f32 %v437, %v629
        %v631 = vpop.f32.mrb[0].mxu0
        %632 = vmatprep.mubr.f32.mxu0 0.0
        %633 = vmatmul.mubr.f32.gmra.mrb[0].mxu0 %v497
        %v634 = vpop.f32.mrb[0].mxu0
        %v635 = vadd.f32 %v442, %v634
        %v636 = vpop.f32.mrb[0].mxu0
        %637 = vmatprep.mubr.f32.mxu0 0.0
        %638 = vmatmul.mubr.f32.gmra.mrb[0].mxu0 %v500
        %v639 = vpop.f32.mrb[0].mxu0
        %v640 = vadd.f32 %v447, %v639
        %v641 = vpop.f32.mrb[0].mxu0
        %642 = vmatprep.mubr.f32.mxu0 0.0
        %643 = vmatmul.mubr.f32.gmra.mrb[0].mxu0 %v503
        %v644 = vpop.f32.mrb[0].mxu0
        %v645 = vadd.f32 %v452, %v644
        %v646 = vpop.f32.mrb[0].mxu0
        %647 = vmatprep.mubr.f32.mxu0 0.0
        %648 = vmatmul.mubr.f32.gmra.mrb[0].mxu0 %v506
        %v649 = vpop.f32.mrb[0].mxu0
        %v650 = vadd.f32 %v457, %v649
        %v651 = vpop.f32.mrb[0].mxu0
        %652 = vdwg.mxu0
        %s653 = scalar_lea.vmem %s2, 256
        %v654 = vld [vmem:[%s653] sm:$0xff]
        %v655 = vld [vmem:[%s653 + $0x8] sm:$0xff]
        %v656 = vld [vmem:[%s653 + $0x10] sm:$0xff]
        %v657 = vld [vmem:[%s653 + $0x18] sm:$0xff]
        %v658 = vld [vmem:[%s653 + $0x20] sm:$0xff]
        %v659 = vld [vmem:[%s653 + $0x28] sm:$0xff]
        %v660 = vld [vmem:[%s653 + $0x30] sm:$0xff]
        %v661 = vld [vmem:[%s653 + $0x38] sm:$0xff]
        %v662 = vld [vmem:[%s653 + $0x40] sm:$0xff]
        %v663 = vld [vmem:[%s653 + $0x48] sm:$0xff]
        %v664 = vld [vmem:[%s653 + $0x50] sm:$0xff]
        %v665 = vld [vmem:[%s653 + $0x58] sm:$0xff]
        %v666 = vld [vmem:[%s653 + $0x60] sm:$0xff]
        %v667 = vld [vmem:[%s653 + $0x68] sm:$0xff]
        %v668 = vld [vmem:[%s653 + $0x70] sm:$0xff]
        %v669 = vld [vmem:[%s653 + $0x78] sm:$0xff]
        %670 = vrot.lane.b32.xlu0 %v223, 126
        %v671 = vpop.permute.xlu0 %670
        %672 = vrot.lane.b32.xlu0 %v224, 126
        %v673 = vpop.permute.xlu0 %672
        %v677 = vsel %vm266, %v654, 0
        %v680 = vsel %vm266, %v655, 0
        %v683 = vsel %vm266, %v656, 0
        %v686 = vsel %vm266, %v657, 0
        %v689 = vsel %vm266, %v658, 0
        %v692 = vsel %vm266, %v659, 0
        %v695 = vsel %vm266, %v660, 0
        %v698 = vsel %vm266, %v661, 0
        %v701 = vsel %vm266, %v662, 0
        %v704 = vsel %vm266, %v663, 0
        %v707 = vsel %vm266, %v664, 0
        %v710 = vsel %vm266, %v665, 0
        %v713 = vsel %vm266, %v666, 0
        %v716 = vsel %vm266, %v667, 0
        %v719 = vsel %vm266, %v668, 0
        %v722 = vsel %vm266, %v669, 0
        %724 = vmatprep.subr.mxu0 0.0
        %725 = vmatpush1.msra.mxu0 %v671
        %726 = vmatprep.subr.mxu0 0.0
        %727 = vmatpush1.msra.mxu0 %v673
        %728 = vmatprep.subr.mxu0 0.0
        %729 = vmatpush1.msra.mxu0 0.0
        %730 = vmatprep.subr.mxu0 0.0
        %731 = vmatpush1.msra.mxu0 0.0
        %732 = vmatprep.subr.mxu0 0.0
        %733 = vmatpush1.msra.mxu0 0.0
        %734 = vmatprep.subr.mxu0 0.0
        %735 = vmatpush1.msra.mxu0 0.0
        %736 = vmatprep.subr.mxu0 0.0
        %737 = vmatpush1.msra.mxu0 0.0
        %738 = vmatprep.subr.mxu0 0.0
        %739 = vmatpush1.msra.mxu0 0.0
        %740 = vmatprep.subr.mxu0 0.0
        %741 = vmatpush1.msra.mxu0 0.0
        %742 = vmatprep.subr.mxu0 0.0
        %743 = vmatpush1.msra.mxu0 0.0
        %744 = vmatprep.subr.mxu0 0.0
        %745 = vmatpush1.msra.mxu0 0.0
        %746 = vmatprep.subr.mxu0 0.0
        %747 = vmatpush1.msra.mxu0 0.0
        %748 = vmatprep.subr.mxu0 0.0
        %749 = vmatpush1.msra.mxu0 0.0
        %750 = vmatprep.subr.mxu0 0.0
        %751 = vmatpush1.msra.mxu0 0.0
        %752 = vmatprep.subr.mxu0 0.0
        %753 = vmatpush1.msra.mxu0 0.0
        %754 = vmatprep.subr.mxu0 0.0
        %755 = vmatpush1.msra.mxu0 0.0
        %756 = vmatprep.subr.mxu0 0.0
        %757 = vmatpush1.msra.mxu0 0.0
        %758 = vmatprep.subr.mxu0 0.0
        %759 = vmatpush1.msra.mxu0 0.0
        %760 = vmatprep.subr.mxu0 0.0
        %761 = vmatpush1.msra.mxu0 0.0
        %762 = vmatprep.subr.mxu0 0.0
        %763 = vmatpush1.msra.mxu0 0.0
        %764 = vmatprep.subr.mxu0 0.0
        %765 = vmatpush1.msra.mxu0 0.0
        %766 = vmatprep.subr.mxu0 0.0
        %767 = vmatpush1.msra.mxu0 0.0
        %768 = vmatprep.subr.mxu0 0.0
        %769 = vmatpush1.msra.mxu0 0.0
        %770 = vmatprep.subr.mxu0 0.0
        %771 = vmatpush1.msra.mxu0 0.0
        %772 = vmatprep.subr.mxu0 0.0
        %773 = vmatpush1.msra.mxu0 0.0
        %774 = vmatprep.subr.mxu0 0.0
        %775 = vmatpush1.msra.mxu0 0.0
        %776 = vmatprep.subr.mxu0 0.0
        %777 = vmatpush1.msra.mxu0 0.0
        %778 = vmatprep.subr.mxu0 0.0
        %779 = vmatpush1.msra.mxu0 0.0
        %780 = vmatprep.subr.mxu0 0.0
        %781 = vmatpush1.msra.mxu0 0.0
        %782 = vmatprep.subr.mxu0 0.0
        %783 = vmatpush1.msra.mxu0 0.0
        %784 = vmatprep.subr.mxu0 0.0
        %785 = vmatpush1.msra.mxu0 0.0
        %786 = vmatprep.subr.mxu0 0.0
        %787 = vmatpush1.msra.mxu0 0.0
        %788 = vmatprep.mubr.f32.mxu0 0.0
        %789 = vmatmul.mubr.f32.gmra.mrb[0].mxu0 %v677
        %v790 = vpop.f32.mrb[0].mxu0
        %v791 = vadd.f32 0.0, %v790
        %v792 = vpop.f32.mrb[0].mxu0
        %793 = vmatprep.mubr.f32.mxu0 0.0
        %794 = vmatmul.mubr.f32.gmra.mrb[0].mxu0 %v680
        %v795 = vpop.f32.mrb[0].mxu0
        %v796 = vadd.f32 0.0, %v795
        %v797 = vpop.f32.mrb[0].mxu0
        %798 = vmatprep.mubr.f32.mxu0 0.0
        %799 = vmatmul.mubr.f32.gmra.mrb[0].mxu0 %v683
        %v800 = vpop.f32.mrb[0].mxu0
        %v801 = vadd.f32 0.0, %v800
        %v802 = vpop.f32.mrb[0].mxu0
        %803 = vmatprep.mubr.f32.mxu0 0.0
        %804 = vmatmul.mubr.f32.gmra.mrb[0].mxu0 %v686
        %v805 = vpop.f32.mrb[0].mxu0
        %v806 = vadd.f32 0.0, %v805
        %v807 = vpop.f32.mrb[0].mxu0
        %808 = vmatprep.mubr.f32.mxu0 0.0
        %809 = vmatmul.mubr.f32.gmra.mrb[0].mxu0 %v689
        %v810 = vpop.f32.mrb[0].mxu0
        %v811 = vadd.f32 0.0, %v810
        %v812 = vpop.f32.mrb[0].mxu0
        %813 = vmatprep.mubr.f32.mxu0 0.0
        %814 = vmatmul.mubr.f32.gmra.mrb[0].mxu0 %v692
        %v815 = vpop.f32.mrb[0].mxu0
        %v816 = vadd.f32 0.0, %v815
        %v817 = vpop.f32.mrb[0].mxu0
        %818 = vmatprep.mubr.f32.mxu0 0.0
        %819 = vmatmul.mubr.f32.gmra.mrb[0].mxu0 %v695
        %v820 = vpop.f32.mrb[0].mxu0
        %v821 = vadd.f32 0.0, %v820
        %v822 = vpop.f32.mrb[0].mxu0
        %823 = vmatprep.mubr.f32.mxu0 0.0
        %824 = vmatmul.mubr.f32.gmra.mrb[0].mxu0 %v698
        %v825 = vpop.f32.mrb[0].mxu0
        %v826 = vadd.f32 0.0, %v825
        %v827 = vpop.f32.mrb[0].mxu0
        %828 = vmatprep.mubr.f32.mxu0 0.0
        %829 = vmatmul.mubr.f32.gmra.mrb[0].mxu0 %v701
        %v830 = vpop.f32.mrb[0].mxu0
        %v831 = vadd.f32 0.0, %v830
        %v832 = vpop.f32.mrb[0].mxu0
        %833 = vmatprep.mubr.f32.mxu0 0.0
        %834 = vmatmul.mubr.f32.gmra.mrb[0].mxu0 %v704
        %v835 = vpop.f32.mrb[0].mxu0
        %v836 = vadd.f32 0.0, %v835
        %v837 = vpop.f32.mrb[0].mxu0
        %838 = vmatprep.mubr.f32.mxu0 0.0
        %839 = vmatmul.mubr.f32.gmra.mrb[0].mxu0 %v707
        %v840 = vpop.f32.mrb[0].mxu0
        %v841 = vadd.f32 0.0, %v840
        %v842 = vpop.f32.mrb[0].mxu0
        %843 = vmatprep.mubr.f32.mxu0 0.0
        %844 = vmatmul.mubr.f32.gmra.mrb[0].mxu0 %v710
        %v845 = vpop.f32.mrb[0].mxu0
        %v846 = vadd.f32 0.0, %v845
        %v847 = vpop.f32.mrb[0].mxu0
        %848 = vmatprep.mubr.f32.mxu0 0.0
        %849 = vmatmul.mubr.f32.gmra.mrb[0].mxu0 %v713
        %v850 = vpop.f32.mrb[0].mxu0
        %v851 = vadd.f32 0.0, %v850
        %v852 = vpop.f32.mrb[0].mxu0
        %853 = vmatprep.mubr.f32.mxu0 0.0
        %854 = vmatmul.mubr.f32.gmra.mrb[0].mxu0 %v716
        %v855 = vpop.f32.mrb[0].mxu0
        %v856 = vadd.f32 0.0, %v855
        %v857 = vpop.f32.mrb[0].mxu0
        %858 = vmatprep.mubr.f32.mxu0 0.0
        %859 = vmatmul.mubr.f32.gmra.mrb[0].mxu0 %v719
        %v860 = vpop.f32.mrb[0].mxu0
        %v861 = vadd.f32 0.0, %v860
        %v862 = vpop.f32.mrb[0].mxu0
        %863 = vmatprep.mubr.f32.mxu0 0.0
        %864 = vmatmul.mubr.f32.gmra.mrb[0].mxu0 %v722
        %v865 = vpop.f32.mrb[0].mxu0
        %v866 = vadd.f32 0.0, %v865
        %v867 = vpop.f32.mrb[0].mxu0
        %868 = vdwg.mxu0
        %v869 = vadd.f32 %v575, %v791
        %v870 = vadd.f32 %v580, %v796
        %v871 = vadd.f32 %v585, %v801
        %v872 = vadd.f32 %v590, %v806
        %v873 = vadd.f32 %v595, %v811
        %v874 = vadd.f32 %v600, %v816
        %v875 = vadd.f32 %v605, %v821
        %v876 = vadd.f32 %v610, %v826
        %v877 = vadd.f32 %v615, %v831
        %v878 = vadd.f32 %v620, %v836
        %v879 = vadd.f32 %v625, %v841
        %v880 = vadd.f32 %v630, %v846
        %v881 = vadd.f32 %v635, %v851
        %v882 = vadd.f32 %v640, %v856
        %v883 = vadd.f32 %v645, %v861
        %v884 = vadd.f32 %v650, %v866
        %s885 = scalar_lea.vmem %s2, 384
        %v886 = vld [vmem:[%s885] sm:$0xff]
        %v887 = vld [vmem:[%s885 + $0x8] sm:$0xff]
        %v888 = vld [vmem:[%s885 + $0x10] sm:$0xff]
        %v889 = vld [vmem:[%s885 + $0x18] sm:$0xff]
        %v890 = vld [vmem:[%s885 + $0x20] sm:$0xff]
        %v891 = vld [vmem:[%s885 + $0x28] sm:$0xff]
        %v892 = vld [vmem:[%s885 + $0x30] sm:$0xff]
        %v893 = vld [vmem:[%s885 + $0x38] sm:$0xff]
        %v894 = vld [vmem:[%s885 + $0x40] sm:$0xff]
        %v895 = vld [vmem:[%s885 + $0x48] sm:$0xff]
        %v896 = vld [vmem:[%s885 + $0x50] sm:$0xff]
        %v897 = vld [vmem:[%s885 + $0x58] sm:$0xff]
        %v898 = vld [vmem:[%s885 + $0x60] sm:$0xff]
        %v899 = vld [vmem:[%s885 + $0x68] sm:$0xff]
        %v900 = vld [vmem:[%s885 + $0x70] sm:$0xff]
        %v901 = vld [vmem:[%s885 + $0x78] sm:$0xff]
        %902 = vrot.lane.b32.xlu0 %v223, 125
        %v903 = vpop.permute.xlu0 %902
        %904 = vrot.lane.b32.xlu0 %v224, 125
        %v905 = vpop.permute.xlu0 %904
        %v909 = vsel %vm266, %v886, 0
        %v912 = vsel %vm266, %v887, 0
        %v915 = vsel %vm266, %v888, 0
        %v918 = vsel %vm266, %v889, 0
        %v921 = vsel %vm266, %v890, 0
        %v924 = vsel %vm266, %v891, 0
        %v927 = vsel %vm266, %v892, 0
        %v930 = vsel %vm266, %v893, 0
        %v933 = vsel %vm266, %v894, 0
        %v936 = vsel %vm266, %v895, 0
        %v939 = vsel %vm266, %v896, 0
        %v942 = vsel %vm266, %v897, 0
        %v945 = vsel %vm266, %v898, 0
        %v948 = vsel %vm266, %v899, 0
        %v951 = vsel %vm266, %v900, 0
        %v954 = vsel %vm266, %v901, 0
        %956 = vmatprep.subr.mxu0 0.0
        %957 = vmatpush1.msra.mxu0 %v903
        %958 = vmatprep.subr.mxu0 0.0
        %959 = vmatpush1.msra.mxu0 %v905
        %960 = vmatprep.subr.mxu0 0.0
        %961 = vmatpush1.msra.mxu0 0.0
        %962 = vmatprep.subr.mxu0 0.0
        %963 = vmatpush1.msra.mxu0 0.0
        %964 = vmatprep.subr.mxu0 0.0
        %965 = vmatpush1.msra.mxu0 0.0
        %966 = vmatprep.subr.mxu0 0.0
        %967 = vmatpush1.msra.mxu0 0.0
        %968 = vmatprep.subr.mxu0 0.0
        %969 = vmatpush1.msra.mxu0 0.0
        %970 = vmatprep.subr.mxu0 0.0
        %971 = vmatpush1.msra.mxu0 0.0
        %972 = vmatprep.subr.mxu0 0.0
        %973 = vmatpush1.msra.mxu0 0.0
        %974 = vmatprep.subr.mxu0 0.0
        %975 = vmatpush1.msra.mxu0 0.0
        %976 = vmatprep.subr.mxu0 0.0
        %977 = vmatpush1.msra.mxu0 0.0
        %978 = vmatprep.subr.mxu0 0.0
        %979 = vmatpush1.msra.mxu0 0.0
        %980 = vmatprep.subr.mxu0 0.0
        %981 = vmatpush1.msra.mxu0 0.0
        %982 = vmatprep.subr.mxu0 0.0
        %983 = vmatpush1.msra.mxu0 0.0
        %984 = vmatprep.subr.mxu0 0.0
        %985 = vmatpush1.msra.mxu0 0.0
        %986 = vmatprep.subr.mxu0 0.0
        %987 = vmatpush1.msra.mxu0 0.0
        %988 = vmatprep.subr.mxu0 0.0
        %989 = vmatpush1.msra.mxu0 0.0
        %990 = vmatprep.subr.mxu0 0.0
        %991 = vmatpush1.msra.mxu0 0.0
        %992 = vmatprep.subr.mxu0 0.0
        %993 = vmatpush1.msra.mxu0 0.0
        %994 = vmatprep.subr.mxu0 0.0
        %995 = vmatpush1.msra.mxu0 0.0
        %996 = vmatprep.subr.mxu0 0.0
        %997 = vmatpush1.msra.mxu0 0.0
        %998 = vmatprep.subr.mxu0 0.0
        %999 = vmatpush1.msra.mxu0 0.0
        %1000 = vmatprep.subr.mxu0 0.0
        %1001 = vmatpush1.msra.mxu0 0.0
        %1002 = vmatprep.subr.mxu0 0.0
        %1003 = vmatpush1.msra.mxu0 0.0
        %1004 = vmatprep.subr.mxu0 0.0
        %1005 = vmatpush1.msra.mxu0 0.0
        %1006 = vmatprep.subr.mxu0 0.0
        %1007 = vmatpush1.msra.mxu0 0.0
        %1008 = vmatprep.subr.mxu0 0.0
        %1009 = vmatpush1.msra.mxu0 0.0
        %1010 = vmatprep.subr.mxu0 0.0
        %1011 = vmatpush1.msra.mxu0 0.0
        %1012 = vmatprep.subr.mxu0 0.0
        %1013 = vmatpush1.msra.mxu0 0.0
        %1014 = vmatprep.subr.mxu0 0.0
        %1015 = vmatpush1.msra.mxu0 0.0
        %1016 = vmatprep.subr.mxu0 0.0
        %1017 = vmatpush1.msra.mxu0 0.0
        %1018 = vmatprep.subr.mxu0 0.0
        %1019 = vmatpush1.msra.mxu0 0.0
        %1020 = vmatprep.mubr.f32.mxu0 0.0
        %1021 = vmatmul.mubr.f32.gmra.mrb[0].mxu0 %v909
        %v1022 = vpop.f32.mrb[0].mxu0
        %v1023 = vadd.f32 0.0, %v1022
        %v1024 = vpop.f32.mrb[0].mxu0
        %1025 = vmatprep.mubr.f32.mxu0 0.0
        %1026 = vmatmul.mubr.f32.gmra.mrb[0].mxu0 %v912
        %v1027 = vpop.f32.mrb[0].mxu0
        %v1028 = vadd.f32 0.0, %v1027
        %v1029 = vpop.f32.mrb[0].mxu0
        %1030 = vmatprep.mubr.f32.mxu0 0.0
        %1031 = vmatmul.mubr.f32.gmra.mrb[0].mxu0 %v915
        %v1032 = vpop.f32.mrb[0].mxu0
        %v1033 = vadd.f32 0.0, %v1032
        %v1034 = vpop.f32.mrb[0].mxu0
        %1035 = vmatprep.mubr.f32.mxu0 0.0
        %1036 = vmatmul.mubr.f32.gmra.mrb[0].mxu0 %v918
        %v1037 = vpop.f32.mrb[0].mxu0
        %v1038 = vadd.f32 0.0, %v1037
        %v1039 = vpop.f32.mrb[0].mxu0
        %1040 = vmatprep.mubr.f32.mxu0 0.0
        %1041 = vmatmul.mubr.f32.gmra.mrb[0].mxu0 %v921
        %v1042 = vpop.f32.mrb[0].mxu0
        %v1043 = vadd.f32 0.0, %v1042
        %v1044 = vpop.f32.mrb[0].mxu0
        %1045 = vmatprep.mubr.f32.mxu0 0.0
        %1046 = vmatmul.mubr.f32.gmra.mrb[0].mxu0 %v924
        %v1047 = vpop.f32.mrb[0].mxu0
        %v1048 = vadd.f32 0.0, %v1047
        %v1049 = vpop.f32.mrb[0].mxu0
        %1050 = vmatprep.mubr.f32.mxu0 0.0
        %1051 = vmatmul.mubr.f32.gmra.mrb[0].mxu0 %v927
        %v1052 = vpop.f32.mrb[0].mxu0
        %v1053 = vadd.f32 0.0, %v1052
        %v1054 = vpop.f32.mrb[0].mxu0
        %1055 = vmatprep.mubr.f32.mxu0 0.0
        %1056 = vmatmul.mubr.f32.gmra.mrb[0].mxu0 %v930
        %v1057 = vpop.f32.mrb[0].mxu0
        %v1058 = vadd.f32 0.0, %v1057
        %v1059 = vpop.f32.mrb[0].mxu0
        %1060 = vmatprep.mubr.f32.mxu0 0.0
        %1061 = vmatmul.mubr.f32.gmra.mrb[0].mxu0 %v933
        %v1062 = vpop.f32.mrb[0].mxu0
        %v1063 = vadd.f32 0.0, %v1062
        %v1064 = vpop.f32.mrb[0].mxu0
        %1065 = vmatprep.mubr.f32.mxu0 0.0
        %1066 = vmatmul.mubr.f32.gmra.mrb[0].mxu0 %v936
        %v1067 = vpop.f32.mrb[0].mxu0
        %v1068 = vadd.f32 0.0, %v1067
        %v1069 = vpop.f32.mrb[0].mxu0
        %1070 = vmatprep.mubr.f32.mxu0 0.0
        %1071 = vmatmul.mubr.f32.gmra.mrb[0].mxu0 %v939
        %v1072 = vpop.f32.mrb[0].mxu0
        %v1073 = vadd.f32 0.0, %v1072
        %v1074 = vpop.f32.mrb[0].mxu0
        %1075 = vmatprep.mubr.f32.mxu0 0.0
        %1076 = vmatmul.mubr.f32.gmra.mrb[0].mxu0 %v942
        %v1077 = vpop.f32.mrb[0].mxu0
        %v1078 = vadd.f32 0.0, %v1077
        %v1079 = vpop.f32.mrb[0].mxu0
        %1080 = vmatprep.mubr.f32.mxu0 0.0
        %1081 = vmatmul.mubr.f32.gmra.mrb[0].mxu0 %v945
        %v1082 = vpop.f32.mrb[0].mxu0
        %v1083 = vadd.f32 0.0, %v1082
        %v1084 = vpop.f32.mrb[0].mxu0
        %1085 = vmatprep.mubr.f32.mxu0 0.0
        %1086 = vmatmul.mubr.f32.gmra.mrb[0].mxu0 %v948
        %v1087 = vpop.f32.mrb[0].mxu0
        %v1088 = vadd.f32 0.0, %v1087
        %v1089 = vpop.f32.mrb[0].mxu0
        %1090 = vmatprep.mubr.f32.mxu0 0.0
        %1091 = vmatmul.mubr.f32.gmra.mrb[0].mxu0 %v951
        %v1092 = vpop.f32.mrb[0].mxu0
        %v1093 = vadd.f32 0.0, %v1092
        %v1094 = vpop.f32.mrb[0].mxu0
        %1095 = vmatprep.mubr.f32.mxu0 0.0
        %1096 = vmatmul.mubr.f32.gmra.mrb[0].mxu0 %v954
        %v1097 = vpop.f32.mrb[0].mxu0
        %v1098 = vadd.f32 0.0, %v1097
        %v1099 = vpop.f32.mrb[0].mxu0
        %1100 = vdwg.mxu0
        %v1101 = vadd.f32 %v869, %v1023
        %v1102 = vadd.f32 %v870, %v1028
        %v1103 = vadd.f32 %v871, %v1033
        %v1104 = vadd.f32 %v872, %v1038
        %v1105 = vadd.f32 %v873, %v1043
        %v1106 = vadd.f32 %v874, %v1048
        %v1107 = vadd.f32 %v875, %v1053
        %v1108 = vadd.f32 %v876, %v1058
        %v1109 = vadd.f32 %v877, %v1063
        %v1110 = vadd.f32 %v878, %v1068
        %v1111 = vadd.f32 %v879, %v1073
        %v1112 = vadd.f32 %v880, %v1078
        %v1113 = vadd.f32 %v881, %v1083
        %v1114 = vadd.f32 %v882, %v1088
        %v1115 = vadd.f32 %v883, %v1093
        %v1116 = vadd.f32 %v884, %v1098
        %v1117 = vmul.f32 %v1101, %v1101
        %v1118 = vmul.f32 %v1102, %v1102
        %v1119 = vmul.f32 %v1103, %v1103
        %v1120 = vmul.f32 %v1104, %v1104
        %v1121 = vmul.f32 %v1105, %v1105
        %v1122 = vmul.f32 %v1106, %v1106
        %v1123 = vmul.f32 %v1107, %v1107
        %v1124 = vmul.f32 %v1108, %v1108
        %v1125 = vmul.f32 %v1109, %v1109
        %v1126 = vmul.f32 %v1110, %v1110
        %v1127 = vmul.f32 %v1111, %v1111
        %v1128 = vmul.f32 %v1112, %v1112
        %v1129 = vmul.f32 %v1113, %v1113
        %v1130 = vmul.f32 %v1114, %v1114
        %v1131 = vmul.f32 %v1115, %v1115
        %v1132 = vmul.f32 %v1116, %v1116
        %v1133 = vld [vmem:[%s3] sm:$0xff]
        %1134 = vmatprep.subr.mxu0 0.0
        %1135 = vmatpush1.msra.mxu0 %v1117
        %1136 = vmatprep.subr.mxu0 0.0
        %1137 = vmatpush1.msra.mxu0 %v1118
        %1138 = vmatprep.subr.mxu0 0.0
        %1139 = vmatpush1.msra.mxu0 %v1119
        %1140 = vmatprep.subr.mxu0 0.0
        %1141 = vmatpush1.msra.mxu0 %v1120
        %1142 = vmatprep.subr.mxu0 0.0
        %1143 = vmatpush1.msra.mxu0 %v1121
        %1144 = vmatprep.subr.mxu0 0.0
        %1145 = vmatpush1.msra.mxu0 %v1122
        %1146 = vmatprep.subr.mxu0 0.0
        %1147 = vmatpush1.msra.mxu0 %v1123
        %1148 = vmatprep.subr.mxu0 0.0
        %1149 = vmatpush1.msra.mxu0 %v1124
        %1150 = vmatprep.subr.mxu0 0.0
        %1151 = vmatpush1.msra.mxu0 %v1125
        %1152 = vmatprep.subr.mxu0 0.0
        %1153 = vmatpush1.msra.mxu0 %v1126
        %1154 = vmatprep.subr.mxu0 0.0
        %1155 = vmatpush1.msra.mxu0 %v1127
        %1156 = vmatprep.subr.mxu0 0.0
        %1157 = vmatpush1.msra.mxu0 %v1128
        %1158 = vmatprep.subr.mxu0 0.0
        %1159 = vmatpush1.msra.mxu0 %v1129
        %1160 = vmatprep.subr.mxu0 0.0
        %1161 = vmatpush1.msra.mxu0 %v1130
        %1162 = vmatprep.subr.mxu0 0.0
        %1163 = vmatpush1.msra.mxu0 %v1131
        %1164 = vmatprep.subr.mxu0 0.0
        %1165 = vmatpush1.msra.mxu0 %v1132
        %1166 = vmatprep.subr.mxu0 0.0
        %1167 = vmatpush1.msra.mxu0 0.0
        %1168 = vmatprep.subr.mxu0 0.0
        %1169 = vmatpush1.msra.mxu0 0.0
        %1170 = vmatprep.subr.mxu0 0.0
        %1171 = vmatpush1.msra.mxu0 0.0
        %1172 = vmatprep.subr.mxu0 0.0
        %1173 = vmatpush1.msra.mxu0 0.0
        %1174 = vmatprep.subr.mxu0 0.0
        %1175 = vmatpush1.msra.mxu0 0.0
        %1176 = vmatprep.subr.mxu0 0.0
        %1177 = vmatpush1.msra.mxu0 0.0
        %1178 = vmatprep.subr.mxu0 0.0
        %1179 = vmatpush1.msra.mxu0 0.0
        %1180 = vmatprep.subr.mxu0 0.0
        %1181 = vmatpush1.msra.mxu0 0.0
        %1182 = vmatprep.subr.mxu0 0.0
        %1183 = vmatpush1.msra.mxu0 0.0
        %1184 = vmatprep.subr.mxu0 0.0
        %1185 = vmatpush1.msra.mxu0 0.0
        %1186 = vmatprep.subr.mxu0 0.0
        %1187 = vmatpush1.msra.mxu0 0.0
        %1188 = vmatprep.subr.mxu0 0.0
        %1189 = vmatpush1.msra.mxu0 0.0
        %1190 = vmatprep.subr.mxu0 0.0
        %1191 = vmatpush1.msra.mxu0 0.0
        %1192 = vmatprep.subr.mxu0 0.0
        %1193 = vmatpush1.msra.mxu0 0.0
        %1194 = vmatprep.subr.mxu0 0.0
        %1195 = vmatpush1.msra.mxu0 0.0
        %1196 = vmatprep.subr.mxu0 0.0
        %1197 = vmatpush1.msra.mxu0 0.0
        %1198 = vmatprep.mubr.f32.mxu0 0.0
        %1199 = vmatmul.mubr.f32.gmra.mrb[0].mxu0 %v1133
        %v1200 = vpop.f32.mrb[0].mxu0
        %v1201 = vadd.f32 0.0, %v1200
        %v1202 = vpop.f32.mrb[0].mxu0
        %1203 = vdwg.mxu0
        %v1204 = vld [vmem:[%s4] sm:$0xff]
        %v1205 = vmax.f32 %v1201, 1e-10
        %v1206 = vlog2.pop %v1205
        %v1207 = vmul.f32 %v1206, 0.6931472
        %1209 = vset.pattern.permute.xlu0 0
        %1210 = vperm.xlu0 %1209, %v1204
        %v1211 = vpop.permute.xlu0 %1210
        %v1213 = vmul.f32 %v1207, %v1211
        %1214 = vset.pattern.permute.xlu0 1
        %1215 = vperm.xlu0 %1214, %v1204
        %v1216 = vpop.permute.xlu0 %1215
        %v1218 = vadd.f32 %v1213, %v1216
        %s1219 = sld [smem:[#allocation2]]
        %v1220 = vmax.f32 %v1218, 1e-06
        %v1221 = vlog2.pop %v1220
        %v1222 = vmul.f32 %v1221, 0.6931472
        %v1223 = vstv %s1219
        %v1224 = vmul.f32 %v1223, %v1222
        %v1225 = vmul.f32 %v1224, 1.442695
        %v1226 = vpow.pop %v1225
        %vm1227 = vcmask 531456
        %v1228 = vsel %vm1227, %v1226, 0.0
        %1229 = vadd.xlane.f32.xlu0 %v1228
        %v1230 = vpop.xlane.xlu0 %1229
        %v1231 = vrot.slane %v1230, 4
        %v1232 = vadd.f32 %v1230, %v1231
        %v1233 = vrot.slane %v1232, 2
        %v1234 = vadd.f32 %v1232, %v1233
        %v1235 = vrot.slane %v1234, 1
        %v1236 = vadd.f32 %v1234, %v1235
        %v1237 = vmul.f32 %v1236, 0.0019230769
        %v1238 = vlog2.pop %v1237
        %v1239 = vmul.f32 %v1238, 0.6931472
        %v1240 = vrcp.pop %v1223
        %v1241 = vmul.f32 %v1239, %v1240
        %v1242 = vmul.f32 %v1241, 1.442695
        %v1243 = vpow.pop %v1242
        %v1244 = vld [vmem:[%s4 + $0x8] sm:$0x1]
        %v1245 = vld [vmem:[%s4 + $0x9] sm:$0x1]
        %v1246 = vmul.f32 %v1243, %v1244
        %v1247 = vadd.f32 %v1246, %v1245
        %vm1248 = vcmask 73728
        %1249 = vst.msk [vmem:[%s217] sm:$0x1] %vm1248, %v1247
        %s1250 = sand.u32 %s138, 1
        %s1251 = scalar_lea.sflag [#allocation4], %s1250
        %s1252 = sand.u32 %s138, 1
        %s1253 = scalar_lea.vmem [#allocation3], %s1252
        // Predicated region
        $region41: #{effv2_gem_forward.1} parent=39 // pred_check
          %p1254 = pneg %p148
        $region42: #{effv2_gem_forward.1} parent=39 // pred_check_branch
          %1256 = sbr.rel (%p1254) target = $region44
        $region43: #{effv2_gem_forward.1} parent=39 // pred_region
          %s1258 = ssub.s32 16, 16
          %1259 = vsyncadd %s1251, %s1258
          %s1260 = smul.addr %s20, 16
          %s1261 = scalar_lea.hbm %s5, %s1260
          %s1263 = sshll.u32 %s1253, 4
          %s1264 = int_to_ptr.vmem [resolvable:$true] %s1263
          %1266 = dma.vmem_to_hbm [thread:$0]  %s1264, 16, %s1261, %s1251
        $region44: #{effv2_gem_forward.1} parent=39 // pred_fallthru
          _
      $region40: #{effv2_gem_forward.1} parent=5 // pred_fallthru
        _
      %p1267 = scmp.le.s32.totalorder 2, %s15
      // Predicated region
      $region45: #{effv2_gem_forward.1} parent=5 // pred_check
        %p1268 = pneg %p1267
      $region46: #{effv2_gem_forward.1} parent=5 // pred_check_branch
        %1270 = sbr.rel (%p1268) target = $region48
      $region47: #{effv2_gem_forward.1} parent=5 // pred_region
        %s1271 = ssub.s32 %s15, 2
        // Predicated region
        $region49: #{effv2_gem_forward.1} parent=47 // pred_check
          %p1272 = pneg %p154
        $region50: #{effv2_gem_forward.1} parent=47 // pred_check_branch
          %1274 = sbr.rel (%p1272) target = $region52
        $region51: #{effv2_gem_forward.1} parent=47 // pred_region
          %s1275 = sand.u32 %s139, 1
          %s1276 = scalar_lea.sflag [#allocation4], %s1275
          %s1277 = sand.u32 %s139, 1
          %s1278 = scalar_lea.vmem [#allocation3], %s1277
          %1279 = dma.done %s1276, 16
        $region52: #{effv2_gem_forward.1} parent=47 // pred_fallthru
          _
      $region48: #{effv2_gem_forward.1} parent=5 // pred_fallthru
        _
    $region6: #{effv2_gem_forward.1} parent=1 // loop_footer
      %s19 = sadd.s32 1, %s15
    $region7: #{effv2_gem_forward.1} parent=1 // loop_footer_branch
      %14 = sbr.rel target = $region3
    $region8: #{effv2_gem_forward.1} parent=1 // loop_exit
      _
    %1280 = vsyncpa [#allocation4], 1
    %s1281 = scalar_lea.sflag [#allocation4], 1
    %1282 = vsyncpa %s1281, 1

</llo_original>
